<compile_context>
chip_gen: v7x
topology: tpu7x:2x2x1
jax: 0.10.0
libtpu: 0.0.40
codegen_flags: <defaults>
</compile_context>

<pallas_src>
import functools

import jax
import jax.numpy as jnp
from jax.experimental import pallas as pl
from jax.experimental.pallas import tpu as pltpu


def _pick_row_tile(ho):
    """Largest-enough row tile that divides Ho and keeps (8,128)-aligned blocks."""
    for th in (8, 16, 32, 64):
        if th <= ho and ho % th == 0:
            return th
    return ho  # full extent (always legal for a BlockSpec)


# ---------------------------------------------------------------------------
# Fast path: stride == 1, channels packed into lanes.
# ---------------------------------------------------------------------------
def _sepconv_packed_kernel(x_ref, wdw_ref, wbd_ref, o_ref, xpad_ref, *,
                           K, dilation, padding, H, W, Cin, TH, Wo):
    # x_ref:    (1, H, W*Cin)          unpadded packed input (one batch element)
    # wdw_ref:  (K*K, Wo*Cin)          depthwise weights, tiled along lanes
    # wbd_ref:  (Wo*Cin, Wo*Cout)      block-diagonal pointwise weight kron(I, Wpw)
    # o_ref:    (1, TH, Wo*Cout)       lane-dense output row block
    # xpad_ref: (Hp, Wp*Cin) f32       padded-image scratch (persists over row tiles)
    r = pl.program_id(1)

    # Build the padded image in VMEM once per batch element (r == 0).
    @pl.when(r == 0)
    def _fill_padded_input():
        if padding > 0:
            xpad_ref[...] = jnp.zeros_like(xpad_ref)
        xpad_ref[pl.ds(padding, H), pl.ds(padding * Cin, W * Cin)] = (
            x_ref[0].astype(jnp.float32))

    wdw = wdw_ref[...].astype(jnp.float32)          # (K*K, Wo*Cin)

    row_base = r * TH
    if TH % 8 == 0:
        row_base = pl.multiple_of(row_base, 8)

    # Depthwise conv: accumulate the K*K taps on the VPU, reading each tap's
    # window straight from the padded scratch ref (lane axis carries Wo*Cin).
    acc = jnp.zeros((TH, Wo * Cin), jnp.float32)
    for ky in range(K):
        for kx in range(K):
            win = xpad_ref[pl.ds(row_base + ky * dilation, TH),
                           pl.ds(kx * dilation * Cin, Wo * Cin)]
            w_tap = wdw[ky * K + kx: ky * K + kx + 1]     # (1, Wo*Cin)
            acc = acc + win * w_tap

    # Pointwise 1x1 conv: one relayout-free matmul on the (otherwise idle) MXU.
    out = jnp.dot(acc, wbd_ref[...].astype(jnp.float32),
                  preferred_element_type=jnp.float32)      # (TH, Wo*Cout)
    o_ref[0] = out.astype(o_ref.dtype)


# ---------------------------------------------------------------------------
# Fallback path: general stride (unpacked compute, lane-dense output slab).
# ---------------------------------------------------------------------------
def _sepconv_general_kernel(x_ref, wdw_ref, wpw_ref, o_ref, *,
                            K, stride, dilation, Ho, Wo, Cin, Cout):
    # x_ref: (1, Hp, Wp, Cin) padded input; o_ref: (1, Ho, Wo*Cout)
    xv = x_ref[0].astype(jnp.float32)
    wdw = wdw_ref[...].astype(jnp.float32)          # (K, K, Cin)

    acc = jnp.zeros((Ho, Wo, Cin), jnp.float32)
    for ky in range(K):
        for kx in range(K):
            h0, w0 = ky * dilation, kx * dilation
            win = jax.lax.slice(
                xv, (h0, w0, 0),
                (h0 + (Ho - 1) * stride + 1, w0 + (Wo - 1) * stride + 1, Cin),
                (stride, stride, 1))
            acc = acc + win * wdw[ky, kx][None, None, :]

    wpw = wpw_ref[...].astype(jnp.float32)          # (Cin, Cout)
    if Cin <= 8:
        # Tiny channel count: unrolled VPU pointwise (no MXU micro-dot).
        out = jnp.zeros((Ho, Wo, Cout), jnp.float32)
        for ci in range(Cin):
            out = out + acc[:, :, ci:ci + 1] * wpw[ci][None, None, :]
    else:
        out = jnp.dot(acc.reshape(Ho * Wo, Cin), wpw,
                      preferred_element_type=jnp.float32).reshape(Ho, Wo, Cout)

    o_ref[0] = out.reshape(Ho, Wo * Cout).astype(o_ref.dtype)


# ---------------------------------------------------------------------------
# Wrapper
# ---------------------------------------------------------------------------
def separable_conv2d(x_nchw, w_dw, w_pw, *, stride=1, padding=0, dilation=1):
    """Forward of SeparableConv2d (bias=False).

    x_nchw: (N, Cin, H, W)
    w_dw:   (Cin, 1, K, K)    -- torch conv1 weight (groups=Cin)
    w_pw:   (Cout, Cin, 1, 1) -- torch pointwise weight
    returns (N, Cout, Ho, Wo)
    """
    N, Cin, H, W = x_nchw.shape
    K = w_dw.shape[-1]
    Cout = w_pw.shape[0]
    Ho = (H + 2 * padding - dilation * (K - 1) - 1) // stride + 1
    Wo = (W + 2 * padding - dilation * (K - 1) - 1) // stride + 1
    Hp, Wp = H + 2 * padding, W + 2 * padding

    x_nhwc = jnp.transpose(x_nchw, (0, 2, 3, 1))           # NCHW -> NHWC (required by interface)
    wdw_kkc = jnp.transpose(w_dw[:, 0], (1, 2, 0))          # (K, K, Cin)
    wpw_io = jnp.transpose(w_pw[:, :, 0, 0], (1, 0))        # (Cin, Cout)

    if stride == 1:
        TH = _pick_row_tile(Ho)
        x_packed = x_nhwc.reshape(N, H, W * Cin)            # lane axis = W*Cin
        # Depthwise weights tiled along the packed lane axis: [t, w*Cin+ci] = wdw[t, ci]
        wdw_tiled = jnp.tile(wdw_kkc.reshape(K * K, 1, Cin),
                             (1, Wo, 1)).reshape(K * K, Wo * Cin)
        # Block-diagonal pointwise weight so the 1x1 conv is a packed matmul.
        wbd = jnp.kron(jnp.eye(Wo, dtype=wpw_io.dtype), wpw_io)  # (Wo*Cin, Wo*Cout)

        kernel = functools.partial(
            _sepconv_packed_kernel, K=K, dilation=dilation, padding=padding,
            H=H, W=W, Cin=Cin, TH=TH, Wo=Wo)

        out_packed = pl.pallas_call(
            kernel,
            out_shape=jax.ShapeDtypeStruct((N, Ho, Wo * Cout), x_nchw.dtype),
            grid=(N, Ho // TH),
            in_specs=[
                pl.BlockSpec((1, H, W * Cin), lambda n, r: (n, 0, 0)),
                pl.BlockSpec((K * K, Wo * Cin), lambda n, r: (0, 0)),
                pl.BlockSpec((Wo * Cin, Wo * Cout), lambda n, r: (0, 0)),
            ],
            out_specs=pl.BlockSpec((1, TH, Wo * Cout), lambda n, r: (n, r, 0)),
            scratch_shapes=[pltpu.VMEM((Hp, Wp * Cin), jnp.float32)],
            compiler_params=pltpu.CompilerParams(
                dimension_semantics=("parallel", "arbitrary"),
                vmem_limit_bytes=32 * 1024 * 1024),
        )(x_packed, wdw_tiled, wbd)
    else:
        # TODO(synk): stride>1 fallback keeps the simpler unpacked formulation
        # (wrapper-side pad); the packed-lane fast path requires stride==1.
        x_pad = jnp.pad(
            x_nhwc, ((0, 0), (padding, padding), (padding, padding), (0, 0)))
        kernel = functools.partial(
            _sepconv_general_kernel, K=K, stride=stride, dilation=dilation,
            Ho=Ho, Wo=Wo, Cin=Cin, Cout=Cout)

        out_packed = pl.pallas_call(
            kernel,
            out_shape=jax.ShapeDtypeStruct((N, Ho, Wo * Cout), x_nchw.dtype),
            grid=(N,),
            in_specs=[
                pl.BlockSpec((1, Hp, Wp, Cin), lambda n: (n, 0, 0, 0)),
                pl.BlockSpec((K, K, Cin), lambda n: (0, 0, 0)),
                pl.BlockSpec((Cin, Cout), lambda n: (0, 0)),
            ],
            out_specs=pl.BlockSpec((1, Ho, Wo * Cout), lambda n: (n, 0, 0)),
            compiler_params=pltpu.CompilerParams(
                dimension_semantics=("parallel",)),
        )(x_pad, wdw_kkc, wpw_io)

    # Unpack the lane-dense slab and return NCHW (required by the torch interface).
    out_nhwc = out_packed.reshape(N, Ho, Wo, Cout)
    return jnp.transpose(out_nhwc, (0, 3, 1, 2))


# ---------------------------------------------------------------------------
# Reference & test
# ---------------------------------------------------------------------------
def _reference(x, w_dw, w_pw, *, stride, padding, dilation):
    Cin = x.shape[1]
    dw = jax.lax.conv_general_dilated(
        x, w_dw, (stride, stride), [(padding, padding), (padding, padding)],
        rhs_dilation=(dilation, dilation),
        dimension_numbers=("NCHW", "OIHW", "NCHW"),
        feature_group_count=Cin)
    return jax.lax.conv_general_dilated(
        dw, w_pw, (1, 1), [(0, 0), (0, 0)],
        dimension_numbers=("NCHW", "OIHW", "NCHW"))


if __name__ == "__main__":
    # Primary config mirrors SeparableConv2d(4, 8, kernel_size=3, stride=1,
    # padding=1, dilation=1, bias=False); extra configs exercise the same fast
    # path with more channels and with dilation.
    configs = [
        dict(cin=4, cout=8, hw=16, k=3, stride=1, padding=1, dilation=1),
        dict(cin=8, cout=16, hw=16, k=3, stride=1, padding=1, dilation=1),
        dict(cin=4, cout=8, hw=16, k=3, stride=1, padding=2, dilation=2),
    ]

    key = jax.random.PRNGKey(0)
    for cfg in configs:
        key, kx, kdw, kpw = jax.random.split(key, 4)
        x = jax.random.normal(kx, (2, cfg["cin"], cfg["hw"], cfg["hw"]),
                              dtype=jnp.float32)
        w_dw = 0.1 * jax.random.normal(
            kdw, (cfg["cin"], 1, cfg["k"], cfg["k"]), dtype=jnp.float32)
        w_pw = 0.1 * jax.random.normal(
            kpw, (cfg["cout"], cfg["cin"], 1, 1), dtype=jnp.float32)

        out = separable_conv2d(x, w_dw, w_pw, stride=cfg["stride"],
                               padding=cfg["padding"], dilation=cfg["dilation"])
        out = jax.block_until_ready(out)

        ref = _reference(x, w_dw, w_pw, stride=cfg["stride"],
                         padding=cfg["padding"], dilation=cfg["dilation"])
        assert out.shape == ref.shape, (cfg, out.shape, ref.shape)
        max_err = float(jnp.max(jnp.abs(out - ref)))
        assert max_err < 2e-3, (cfg, max_err)

    print("KERNEL_OK")
</pallas_src>

<mosaic_0001>
module attributes {stable_mosaic.version = 11 : i64} {
  func.func @_sepconv_packed_kernel(%arg0: i32, %arg1: i32, %arg2: memref<1x16x64xf32, #tpu.memory_space<vmem>>, %arg3: memref<9x64xf32, #tpu.memory_space<vmem>>, %arg4: memref<64x128xf32, #tpu.memory_space<vmem>>, %arg5: memref<1x8x128xf32, #tpu.memory_space<vmem>>, %arg6: memref<18x72xf32, #tpu.memory_space<vmem>>) attributes {dimension_semantics = [#tpu.dimension_semantics<parallel>, #tpu.dimension_semantics<arbitrary>], iteration_bounds = array<i64: 2, 2>, scalar_prefetch = 0 : i64, scratch_operands = 1 : i64, tpu.core_type = #tpu.core_type<tc>, window_params = [{transform_indices = @transform_0, window_bounds = array<i64: 1, 16, 64>}, {pipeline_mode = #tpu.pipeline_mode<synchronous>, transform_indices = @transform_1, window_bounds = array<i64: 9, 64>}, {pipeline_mode = #tpu.pipeline_mode<synchronous>, transform_indices = @transform_2, window_bounds = array<i64: 64, 128>}, {transform_indices = @transform_3, window_bounds = array<i64: 1, 8, 128>}]} {
    %c0_i32 = arith.constant 0 : i32
    %0 = arith.cmpi eq, %arg1, %c0_i32 : i32
    %1 = arith.extui %0 : i1 to i32
    %c0_i32_0 = arith.constant 0 : i32
    %2 = arith.cmpi ne, %1, %c0_i32_0 : i32
    scf.if %2 {
      %cst_22 = arith.constant 0.000000e+00 : f32
      %75 = vector.broadcast %cst_22 : f32 to vector<18x72xf32>
      %c0_23 = arith.constant 0 : index
      %c0_24 = arith.constant 0 : index
      %76 = vector.load %arg6[%c0_23, %c0_24] : memref<18x72xf32, #tpu.memory_space<vmem>>, vector<18x72xf32>
      tpu.vector_store %arg6[%c0_23, %c0_24], %75 {strides = array<i32>} : memref<18x72xf32, #tpu.memory_space<vmem>>, vector<18x72xf32>,
      %c0_25 = arith.constant 0 : index
      %c0_26 = arith.constant 0 : index
      %c0_27 = arith.constant 0 : index
      %77 = vector.load %arg2[%c0_25, %c0_26, %c0_27] : memref<1x16x64xf32, #tpu.memory_space<vmem>>, vector<1x16x64xf32>
      %78 = vector.shape_cast %77 : vector<1x16x64xf32> to vector<16x64xf32>
      %c1 = arith.constant 1 : index
      %c4_28 = arith.constant 4 : index
      %79 = vector.load %arg6[%c1, %c4_28] : memref<18x72xf32, #tpu.memory_space<vmem>>, vector<16x64xf32>
      tpu.vector_store %arg6[%c1, %c4_28], %78 {strides = array<i32>} : memref<18x72xf32, #tpu.memory_space<vmem>>, vector<16x64xf32>,
    } else {
    }
    %c0 = arith.constant 0 : index
    %c0_1 = arith.constant 0 : index
    %3 = vector.load %arg3[%c0, %c0_1] : memref<9x64xf32, #tpu.memory_space<vmem>>, vector<9x64xf32>
    %c8_i32 = arith.constant 8 : i32
    %4 = arith.muli %arg1, %c8_i32 : i32
    %5 = tpu.assume_multiple %4, 8 : i32
    %cst = arith.constant 0.000000e+00 : f32
    %6 = vector.broadcast %cst : f32 to vector<8x64xf32>
    %c0_i32_2 = arith.constant 0 : i32
    %7 = arith.addi %5, %c0_i32_2 : i32
    %8 = arith.index_cast %7 : i32 to index
    %c0_3 = arith.constant 0 : index
    %9 = vector.load %arg6[%8, %c0_3] : memref<18x72xf32, #tpu.memory_space<vmem>>, vector<8x64xf32>
    %10 = vector.extract_strided_slice %3 {offsets = [0, 0], sizes = [1, 64], strides = [1, 1]} : vector<9x64xf32> to vector<1x64xf32>
    %11 = vector.broadcast %10 : vector<1x64xf32> to vector<8x64xf32>
    %12 = arith.mulf %9, %11 : vector<8x64xf32>
    %13 = arith.addf %6, %12 : vector<8x64xf32>
    %c0_i32_4 = arith.constant 0 : i32
    %14 = arith.addi %5, %c0_i32_4 : i32
    %15 = arith.index_cast %14 : i32 to index
    %c4 = arith.constant 4 : index
    %16 = vector.load %arg6[%15, %c4] : memref<18x72xf32, #tpu.memory_space<vmem>>, vector<8x64xf32>
    %17 = vector.extract_strided_slice %3 {offsets = [1, 0], sizes = [1, 64], strides = [1, 1]} : vector<9x64xf32> to vector<1x64xf32>
    %18 = vector.broadcast %17 : vector<1x64xf32> to vector<8x64xf32>
    %19 = arith.mulf %16, %18 : vector<8x64xf32>
    %20 = arith.addf %13, %19 : vector<8x64xf32>
    %c0_i32_5 = arith.constant 0 : i32
    %21 = arith.addi %5, %c0_i32_5 : i32
    %22 = arith.index_cast %21 : i32 to index
    %c8 = arith.constant 8 : index
    %23 = vector.load %arg6[%22, %c8] : memref<18x72xf32, #tpu.memory_space<vmem>>, vector<8x64xf32>
    %24 = vector.extract_strided_slice %3 {offsets = [2, 0], sizes = [1, 64], strides = [1, 1]} : vector<9x64xf32> to vector<1x64xf32>
    %25 = vector.broadcast %24 : vector<1x64xf32> to vector<8x64xf32>
    %26 = arith.mulf %23, %25 : vector<8x64xf32>
    %27 = arith.addf %20, %26 : vector<8x64xf32>
    %c1_i32 = arith.constant 1 : i32
    %28 = arith.addi %5, %c1_i32 : i32
    %29 = arith.index_cast %28 : i32 to index
    %c0_6 = arith.constant 0 : index
    %30 = vector.load %arg6[%29, %c0_6] : memref<18x72xf32, #tpu.memory_space<vmem>>, vector<8x64xf32>
    %31 = vector.extract_strided_slice %3 {offsets = [3, 0], sizes = [1, 64], strides = [1, 1]} : vector<9x64xf32> to vector<1x64xf32>
    %32 = vector.broadcast %31 : vector<1x64xf32> to vector<8x64xf32>
    %33 = arith.mulf %30, %32 : vector<8x64xf32>
    %34 = arith.addf %27, %33 : vector<8x64xf32>
    %c1_i32_7 = arith.constant 1 : i32
    %35 = arith.addi %5, %c1_i32_7 : i32
    %36 = arith.index_cast %35 : i32 to index
    %c4_8 = arith.constant 4 : index
    %37 = vector.load %arg6[%36, %c4_8] : memref<18x72xf32, #tpu.memory_space<vmem>>, vector<8x64xf32>
    %38 = vector.extract_strided_slice %3 {offsets = [4, 0], sizes = [1, 64], strides = [1, 1]} : vector<9x64xf32> to vector<1x64xf32>
    %39 = vector.broadcast %38 : vector<1x64xf32> to vector<8x64xf32>
    %40 = arith.mulf %37, %39 : vector<8x64xf32>
    %41 = arith.addf %34, %40 : vector<8x64xf32>
    %c1_i32_9 = arith.constant 1 : i32
    %42 = arith.addi %5, %c1_i32_9 : i32
    %43 = arith.index_cast %42 : i32 to index
    %c8_10 = arith.constant 8 : index
    %44 = vector.load %arg6[%43, %c8_10] : memref<18x72xf32, #tpu.memory_space<vmem>>, vector<8x64xf32>
    %45 = vector.extract_strided_slice %3 {offsets = [5, 0], sizes = [1, 64], strides = [1, 1]} : vector<9x64xf32> to vector<1x64xf32>
    %46 = vector.broadcast %45 : vector<1x64xf32> to vector<8x64xf32>
    %47 = arith.mulf %44, %46 : vector<8x64xf32>
    %48 = arith.addf %41, %47 : vector<8x64xf32>
    %c2_i32 = arith.constant 2 : i32
    %49 = arith.addi %5, %c2_i32 : i32
    %50 = arith.index_cast %49 : i32 to index
    %c0_11 = arith.constant 0 : index
    %51 = vector.load %arg6[%50, %c0_11] : memref<18x72xf32, #tpu.memory_space<vmem>>, vector<8x64xf32>
    %52 = vector.extract_strided_slice %3 {offsets = [6, 0], sizes = [1, 64], strides = [1, 1]} : vector<9x64xf32> to vector<1x64xf32>
    %53 = vector.broadcast %52 : vector<1x64xf32> to vector<8x64xf32>
    %54 = arith.mulf %51, %53 : vector<8x64xf32>
    %55 = arith.addf %48, %54 : vector<8x64xf32>
    %c2_i32_12 = arith.constant 2 : i32
    %56 = arith.addi %5, %c2_i32_12 : i32
    %57 = arith.index_cast %56 : i32 to index
    %c4_13 = arith.constant 4 : index
    %58 = vector.load %arg6[%57, %c4_13] : memref<18x72xf32, #tpu.memory_space<vmem>>, vector<8x64xf32>
    %59 = vector.extract_strided_slice %3 {offsets = [7, 0], sizes = [1, 64], strides = [1, 1]} : vector<9x64xf32> to vector<1x64xf32>
    %60 = vector.broadcast %59 : vector<1x64xf32> to vector<8x64xf32>
    %61 = arith.mulf %58, %60 : vector<8x64xf32>
    %62 = arith.addf %55, %61 : vector<8x64xf32>
    %c2_i32_14 = arith.constant 2 : i32
    %63 = arith.addi %5, %c2_i32_14 : i32
    %64 = arith.index_cast %63 : i32 to index
    %c8_15 = arith.constant 8 : index
    %65 = vector.load %arg6[%64, %c8_15] : memref<18x72xf32, #tpu.memory_space<vmem>>, vector<8x64xf32>
    %66 = vector.extract_strided_slice %3 {offsets = [8, 0], sizes = [1, 64], strides = [1, 1]} : vector<9x64xf32> to vector<1x64xf32>
    %67 = vector.broadcast %66 : vector<1x64xf32> to vector<8x64xf32>
    %68 = arith.mulf %65, %67 : vector<8x64xf32>
    %69 = arith.addf %62, %68 : vector<8x64xf32>
    %c0_16 = arith.constant 0 : index
    %c0_17 = arith.constant 0 : index
    %70 = vector.load %arg4[%c0_16, %c0_17] : memref<64x128xf32, #tpu.memory_space<vmem>>, vector<64x128xf32>
    %cst_18 = arith.constant dense<0.000000e+00> : vector<8x128xf32>
    %71 = tpu.matmul %69, %70, %cst_18 {dimension_numbers = #tpu.dot_dimension_numbers<[1], [0], [0], [1], [0, 0, 1, 1], [], []>} : vector<8x64xf32>, vector<64x128xf32>, vector<8x128xf32> -> vector<8x128xf32>
    %c0_19 = arith.constant 0 : index
    %c0_20 = arith.constant 0 : index
    %c0_21 = arith.constant 0 : index
    %72 = vector.load %arg5[%c0_19, %c0_20, %c0_21] : memref<1x8x128xf32, #tpu.memory_space<vmem>>, vector<1x8x128xf32>
    %73 = vector.shape_cast %72 : vector<1x8x128xf32> to vector<8x128xf32>
    %74 = vector.shape_cast %71 : vector<8x128xf32> to vector<1x8x128xf32>
    tpu.vector_store %arg5[%c0_19, %c0_20, %c0_21], %74 {strides = array<i32>} : memref<1x8x128xf32, #tpu.memory_space<vmem>>, vector<1x8x128xf32>,
    return
  }
  func.func @transform_0(%arg0: i32, %arg1: i32) -> (i32, i32, i32) {
    %c0_i32 = arith.constant 0 : i32
    %c0_i32_0 = arith.constant 0 : i32
    %c0_i32_1 = arith.constant 0 : i32
    return %arg0, %c0_i32, %c0_i32_0 : i32, i32, i32
  }
  func.func @transform_1(%arg0: i32, %arg1: i32) -> (i32, i32) {
    %c0_i32 = arith.constant 0 : i32
    %c0_i32_0 = arith.constant 0 : i32
    %c0_i32_1 = arith.constant 0 : i32
    return %c0_i32, %c0_i32_0 : i32, i32
  }
  func.func @transform_2(%arg0: i32, %arg1: i32) -> (i32, i32) {
    %c0_i32 = arith.constant 0 : i32
    %c0_i32_0 = arith.constant 0 : i32
    %c0_i32_1 = arith.constant 0 : i32
    return %c0_i32, %c0_i32_0 : i32, i32
  }
  func.func @transform_3(%arg0: i32, %arg1: i32) -> (i32, i32, i32) {
    %c0_i32 = arith.constant 0 : i32
    %c0_i32_0 = arith.constant 0 : i32
    return %arg0, %arg1, %c0_i32 : i32, i32, i32
  }
}

</mosaic_0001>

<llo_original>
// kernel: tpu_custom_call.1
$region0: #{tpu_custom_call.1}
  #allocation0 [shape = 'u32[]', space=smem, size = 0x4, offset = 0x4, fixed_abs, tag = 'smem constant byte address 0x4 - core index']
  #allocation1 [shape = 'u32[144,128]{1,0:T(1,128)}', space=vmem, size = 0x12000, scoped, tag = 'internal scratch']
  #allocation2 [shape = 'f32[18,72]{1,0:T(8,128)}', space=vmem, size = 0x3000, scoped, tag = 'scratch operand']
  %s0 = inlined_call_operand.hbm [shape: f32[2,16,64], index: 0, kind: input, shape index: {}]
  %s1 = inlined_call_operand.hbm [shape: f32[9,64], index: 1, kind: input, shape index: {}]
  %s2 = inlined_call_operand.hbm [shape: f32[64,128], index: 2, kind: input, shape index: {}]
  %s3 = inlined_call_operand.hbm [shape: f32[2,16,128], index: 3, kind: output, shape index: {}]
  %s4 = sld [smem:[#allocation0]]
  $region61: #{tpu_custom_call.1} parent=0
    _
  %s6 = ssub.s32 1, %s4
  %s7 = scalar_select 0, %s6, %s4
  $region1: #{tpu_custom_call.1} parent=0
    #allocation3 [shape = 'u8[16384]{0}', space=vmem, size = 0x4000, scoped, tag = 'input window, operand 0']
    #allocation4 [shape = 's32[2]{0}', space=sflag, size = 0x8, scoped, tag = 'scoped memory for tpu_custom_call.1']
    #allocation5 [shape = 's32[2]{0}', space=sflag, size = 0x8, scoped, tag = 'scoped memory for tpu_custom_call.1']
    #allocation6 [shape = 'u8[8192]{0}', space=vmem, size = 0x2000, scoped, tag = 'input window, operand 1, single buffered']
    #allocation7 [shape = 's32[1]{0}', space=sflag, size = 0x4, scoped, tag = 'scoped memory for tpu_custom_call.1']
    #allocation8 [shape = 'u8[32768]{0}', space=vmem, size = 0x8000, scoped, tag = 'input window, operand 2, single buffered']
    #allocation9 [shape = 'u8[8192]{0}', space=vmem, size = 0x2000, scoped, tag = 'output window, operand 0']
    %8 = vsyncpa [#allocation4], 0
    %s9 = scalar_lea.sflag [#allocation4], 1
    %10 = vsyncpa %s9, 0
    %11 = vsyncpa [#allocation7], 0
    %12 = vsyncpa [#allocation5], 0
    %s13 = scalar_lea.sflag [#allocation5], 1
    %14 = vsyncpa %s13, 0
    loop: start=0, step=1, limit=6
    $region2: #{tpu_custom_call.1} parent=1 // loop_pre_header
      _
    $region3: #{tpu_custom_call.1} parent=1 // loop_header
      %s16 = sphi 0, %s20
      %p17 = scmp.ge.s32.totalorder %s16, 6
      %s23 = sphi 0, %s35
      %s24 = sphi 0, %s31
      %s25 = sphi 0, %s23
      %s26 = sphi 0, %s24
      %s27 = sphi 0, %s25
      %s28 = sphi 0, %s26
      %s38 = sphi 0, %s40
      %s41 = sphi 0, %s38
      %s42 = sphi 0, %s41
      %s58 = sphi 0, %s42
      %s62 = sphi 0, %s62
      %s64 = sphi 0, %s62
      %s65 = sphi 0, %s64
      %s79 = sphi 0, %s65
      %s83 = sphi 0, %s83
      %s85 = sphi 0, %s83
      %s86 = sphi 0, %s85
      %s100 = sphi 0, %s86
      %s108 = sphi 0, %s110
      %s111 = sphi 0, %s108
      %s112 = sphi 0, %s111
      %s128 = sphi 0, %s112
    $region4: #{tpu_custom_call.1} parent=1 // loop_header_branch
      %19 = sbr.rel (%p17) target = $region8
    $region5: #{tpu_custom_call.1} parent=1 // loop_body
      %s21 = ssub.s32 %s16, 1
      %s22 = ssub.s32 %s16, 2
      %s29 = sadd.s32 1, %s24
      %p30 = scmp.ge.s32.totalorder %s29, 2
      %s31 = scalar_select %p30, 0, %s29
      %s32 = sadd.s32 1, %s23
      %s33 = scalar_select %p30, %s32, %s23
      %p34 = scmp.ge.s32.totalorder %s33, 2
      %s35 = scalar_select %p34, 0, %s33
      %s36 = ssub.s32 %s23, %s35
      %p37 = scmp.eq.s32.totalorder %s36, 0
      %s39 = sadd.s32 %s38, 1
      %s40 = scalar_select %p37, %s38, %s39
      %p43 = pneg %p37
      %p44 = scmp.eq.s32.totalorder %s16, 3
      %p45 = por %p43, %p44
      %p46 = scmp.ne.s32.totalorder %s38, %s41
      %p47 = scmp.eq.s32.totalorder %s16, 0
      %p48 = por %p46, %p47
      %p49 = scmp.ne.s32.totalorder %s38, %s41
      %p50 = scmp.eq.s32.totalorder %s21, 3
      %p51 = por %p49, %p50
      %p52 = scmp.ne.s32.totalorder %s41, %s42
      %p53 = scmp.eq.s32.totalorder %s21, 0
      %p54 = por %p52, %p53
      %p55 = scmp.ne.s32.totalorder %s41, %s42
      %p56 = scmp.eq.s32.totalorder %s22, 3
      %p57 = por %p55, %p56
      %p59 = scmp.ne.s32.totalorder %s42, %s58
      %p60 = scmp.eq.s32.totalorder %s22, 0
      %p61 = por %p59, %p60
      %s63 = sadd.s32 %s62, 1
      %p66 = scmp.eq.s32.totalorder %s16, 3
      %p67 = scmp.ne.s32.totalorder %s62, %s64
      %p68 = scmp.eq.s32.totalorder %s16, 0
      %p69 = por %p67, %p68
      %p70 = scmp.ne.s32.totalorder %s62, %s64
      %p71 = scmp.eq.s32.totalorder %s21, 3
      %p72 = por %p70, %p71
      %p73 = scmp.ne.s32.totalorder %s64, %s65
      %p74 = scmp.eq.s32.totalorder %s21, 0
      %p75 = por %p73, %p74
      %p76 = scmp.ne.s32.totalorder %s64, %s65
      %p77 = scmp.eq.s32.totalorder %s22, 3
      %p78 = por %p76, %p77
      %p80 = scmp.ne.s32.totalorder %s65, %s79
      %p81 = scmp.eq.s32.totalorder %s22, 0
      %p82 = por %p80, %p81
      %s84 = sadd.s32 %s83, 1
      %p87 = scmp.eq.s32.totalorder %s16, 3
      %p88 = scmp.ne.s32.totalorder %s83, %s85
      %p89 = scmp.eq.s32.totalorder %s16, 0
      %p90 = por %p88, %p89
      %p91 = scmp.ne.s32.totalorder %s83, %s85
      %p92 = scmp.eq.s32.totalorder %s21, 3
      %p93 = por %p91, %p92
      %p94 = scmp.ne.s32.totalorder %s85, %s86
      %p95 = scmp.eq.s32.totalorder %s21, 0
      %p96 = por %p94, %p95
      %p97 = scmp.ne.s32.totalorder %s85, %s86
      %p98 = scmp.eq.s32.totalorder %s22, 3
      %p99 = por %p97, %p98
      %p101 = scmp.ne.s32.totalorder %s86, %s100
      %p102 = scmp.eq.s32.totalorder %s22, 0
      %p103 = por %p101, %p102
      %s104 = ssub.s32 %s23, %s35
      %s105 = ssub.s32 %s24, %s31
      %s106 = sor.u32 %s104, %s105
      %p107 = scmp.eq.s32.totalorder %s106, 0
      %s109 = sadd.s32 %s108, 1
      %s110 = scalar_select %p107, %s108, %s109
      %p113 = pneg %p107
      %p114 = scmp.eq.s32.totalorder %s16, 3
      %p115 = por %p113, %p114
      %p116 = scmp.ne.s32.totalorder %s108, %s111
      %p117 = scmp.eq.s32.totalorder %s16, 0
      %p118 = por %p116, %p117
      %p119 = scmp.ne.s32.totalorder %s108, %s111
      %p120 = scmp.eq.s32.totalorder %s21, 3
      %p121 = por %p119, %p120
      %p122 = scmp.ne.s32.totalorder %s111, %s112
      %p123 = scmp.eq.s32.totalorder %s21, 0
      %p124 = por %p122, %p123
      %p125 = scmp.ne.s32.totalorder %s111, %s112
      %p126 = scmp.eq.s32.totalorder %s22, 3
      %p127 = por %p125, %p126
      %p129 = scmp.ne.s32.totalorder %s112, %s128
      %p130 = scmp.eq.s32.totalorder %s22, 0
      %p131 = por %p129, %p130
      %p132 = scmp.le.s32.totalorder 1, %s16
      %p133 = scmp.lt.s32.totalorder %s16, 5
      %p134 = pnand %p132, %p133
      %p135 = pneg %p134
      // Predicated region
      $region9: #{tpu_custom_call.1} parent=5 // pred_check
        _
      $region10: #{tpu_custom_call.1} parent=5 // pred_check_branch
        %137 = sbr.rel (%p134) target = $region12
      $region11: #{tpu_custom_call.1} parent=5 // pred_region
        %s138 = ssub.s32 %s16, 1
        // Predicated region
        $region13: #{tpu_custom_call.1} parent=11 // pred_check
          %p139 = pneg %p75
        $region14: #{tpu_custom_call.1} parent=11 // pred_check_branch
          %141 = sbr.rel (%p139) target = $region16
        $region15: #{tpu_custom_call.1} parent=11 // pred_region
          %s143 = ssub.s32 256, 256
          %144 = vsyncadd [#allocation7], %s143
          %s145 = sshll.u32 [#allocation6], 4
          %s146 = int_to_ptr.vmem [resolvable:$true] %s145
          %151 = dma.hbm_to_vmem [thread:$0]  %s1, 256, %s146, [#allocation7], 128, 128, 8
        $region16: #{tpu_custom_call.1} parent=11 // pred_fallthru
          _
        // Predicated region
        $region17: #{tpu_custom_call.1} parent=11 // pred_check
          %p152 = pneg %p96
        $region18: #{tpu_custom_call.1} parent=11 // pred_check_branch
          %154 = sbr.rel (%p152) target = $region20
        $region19: #{tpu_custom_call.1} parent=11 // pred_region
          %s156 = ssub.s32 1024, 1024
          %157 = vsyncadd [#allocation7], %s156
          %s158 = sshll.u32 [#allocation8], 4
          %s159 = int_to_ptr.vmem [resolvable:$true] %s158
          %164 = dma.hbm_to_vmem [thread:$0]  %s2, 1024, %s159, [#allocation7], 128, 128, 8
        $region20: #{tpu_custom_call.1} parent=11 // pred_fallthru
          _
      $region12: #{tpu_custom_call.1} parent=5 // pred_fallthru
        _
      %p165 = scmp.lt.s32.totalorder %s16, 4
      // Predicated region
      $region21: #{tpu_custom_call.1} parent=5 // pred_check
        %p166 = pneg %p165
      $region22: #{tpu_custom_call.1} parent=5 // pred_check_branch
        %168 = sbr.rel (%p166) target = $region24
      $region23: #{tpu_custom_call.1} parent=5 // pred_region
        // Predicated region
        $region25: #{tpu_custom_call.1} parent=23 // pred_check
          %p169 = pneg %p48
        $region26: #{tpu_custom_call.1} parent=23 // pred_check_branch
          %171 = sbr.rel (%p169) target = $region28
        $region27: #{tpu_custom_call.1} parent=23 // pred_region
          %s172 = sand.u32 %s38, 1
          %s173 = scalar_lea.sflag [#allocation4], %s172
          %s174 = sand.u32 %s38, 1
          %s175 = smul.addr %s174, 16
          %s176 = scalar_lea.vmem [#allocation3], %s175
          %s178 = ssub.s32 256, 256
          %179 = vsyncadd %s173, %s178
          %s180 = smul.addr %s23, 2
          %s181 = smul.addr %s180, 128
          %s182 = scalar_lea.hbm %s0, %s181
          %s183 = sshll.u32 %s176, 4
          %s184 = int_to_ptr.vmem [resolvable:$true] %s183
          %189 = dma.hbm_to_vmem [thread:$0]  %s182, 256, %s184, %s173, 128, 128, 8
        $region28: #{tpu_custom_call.1} parent=23 // pred_fallthru
          _
      $region24: #{tpu_custom_call.1} parent=5 // pred_fallthru
        _
      %p190 = scmp.le.s32.totalorder 1, %s16
      %p191 = scmp.lt.s32.totalorder %s16, 5
      %p192 = pnand %p190, %p191
      %p193 = pneg %p192
      // Predicated region
      $region29: #{tpu_custom_call.1} parent=5 // pred_check
        _
      $region30: #{tpu_custom_call.1} parent=5 // pred_check_branch
        %195 = sbr.rel (%p192) target = $region32
      $region31: #{tpu_custom_call.1} parent=5 // pred_region
        %s196 = ssub.s32 %s16, 1
        %s197 = sand.u32 %s41, 1
        %s198 = scalar_lea.sflag [#allocation4], %s197
        %s199 = sand.u32 %s41, 1
        %s200 = smul.addr %s199, 16
        %s201 = scalar_lea.vmem [#allocation3], %s200
        // Predicated region
        $region33: #{tpu_custom_call.1} parent=31 // pred_check
          %p202 = pneg %p54
        $region34: #{tpu_custom_call.1} parent=31 // pred_check_branch
          %204 = sbr.rel (%p202) target = $region36
        $region35: #{tpu_custom_call.1} parent=31 // pred_region
          %205 = dma.done %s198, 256
        $region36: #{tpu_custom_call.1} parent=31 // pred_fallthru
          _
        // Predicated region
        $region37: #{tpu_custom_call.1} parent=31 // pred_check
          %p206 = pneg %p75
        $region38: #{tpu_custom_call.1} parent=31 // pred_check_branch
          %208 = sbr.rel (%p206) target = $region40
        $region39: #{tpu_custom_call.1} parent=31 // pred_region
          %209 = dma.done [#allocation7], 256
        $region40: #{tpu_custom_call.1} parent=31 // pred_fallthru
          _
        // Predicated region
        $region41: #{tpu_custom_call.1} parent=31 // pred_check
          %p210 = pneg %p96
        $region42: #{tpu_custom_call.1} parent=31 // pred_check_branch
          %212 = sbr.rel (%p210) target = $region44
        $region43: #{tpu_custom_call.1} parent=31 // pred_region
          %213 = dma.done [#allocation7], 1024
        $region44: #{tpu_custom_call.1} parent=31 // pred_fallthru
          _
        %s214 = sand.u32 %s41, 1
        %s215 = scalar_lea.sflag [#allocation4], %s214
        %s216 = sand.u32 %s41, 1
        %s217 = smul.addr %s216, 16
        %s218 = scalar_lea.vmem [#allocation3], %s217
        %p219 = pneg %p54
        %p220 = pneg %p51
        %p221 = pneg %p75
        %p222 = pneg %p72
        %p223 = pneg %p96
        %p224 = pneg %p93
        %p225 = pneg %p124
        %p226 = pneg %p121
        %s227 = sand.u32 %s111, 1
        %s228 = scalar_lea.sflag [#allocation5], %s227
        %s229 = sand.u32 %s111, 1
        %s230 = smul.addr %s229, 8
        %s231 = scalar_lea.vmem [#allocation9], %s230
        %p232 = scmp.eq.s32.totalorder %s26, 0
        // Predicated region
        $region45: #{tpu_custom_call.1} parent=31 // pred_check
          %p233 = pneg %p232
        $region46: #{tpu_custom_call.1} parent=31 // pred_check_branch
          %235 = sbr.rel (%p233) target = $region48
        $region47: #{tpu_custom_call.1} parent=31 // pred_region
          %vm236 = vcmask 588800
          %237 = vst.msk [vmem:[#allocation2] sm:$0xff] %vm236, 0.0
          %238 = vst.msk [vmem:[#allocation2 + $0x8] sm:$0xff] %vm236, 0.0
          %vm239 = vcmask 582656
          %240 = vst.msk [vmem:[#allocation2 + $0x10] sm:$0x3] %vm239, 0.0
          %v241 = vld [vmem:[%s201] sm:$0xff]
          %v242 = vld [vmem:[%s201 + $0x8] sm:$0xff]
          %245 = vrot.lane.b32.xlu0 %v241, 4
          %v246 = vpop.permute.xlu0 %245
          %247 = vrot.lane.b32.xlu0 %v242, 4
          %v248 = vpop.permute.xlu0 %247
          %vm251 = vcmask 556064
          %252 = vst.msk [vmem:[#allocation2 + $0x1] sm:$0xff] %vm251, %v246
          %253 = vst.msk [vmem:[#allocation2 + $0x9] sm:$0xff] %vm251, %v248
        $region48: #{tpu_custom_call.1} parent=31 // pred_fallthru
          _
        %v254 = vld [vmem:[#allocation6] sm:$0xff]
        %v255 = vld [vmem:[#allocation6 + $0x8] sm:$0x1]
        %s256 = smul.u32 %s26, 8
        %s257 = scalar_lea.vmem [#allocation2], %s256
        %v258 = vld [vmem:[%s257] sm:$0xff]
        %v259 = vlaneseq
        %v260 = vshrl.u32 %v259, 7
        %v261 = vsub.s32 0, %v260
        %v262 = vrot.slane %v254, %v261
        %v263 = vmul.f32 %v258, %v262
        %v264 = vadd.f32 %v263, 0.0
        %v265 = vlaneseq
        %v266 = vshrl.u32 %v265, 7
        %v267 = vsub.s32 1, %v266
        %v268 = vrot.slane %v254, %v267
        %270 = vrot.lane.b32.xlu0 %v268, 4
        %v271 = vpop.permute.xlu0 %270
        %v273 = vmul.f32 %v258, %v271
        %275 = vrot.lane.b32.xlu0 %v273, 124
        %v276 = vpop.permute.xlu0 %275
        %v278 = vadd.f32 %v264, %v276
        %v279 = vlaneseq
        %v280 = vshrl.u32 %v279, 7
        %v281 = vsub.s32 2, %v280
        %v282 = vrot.slane %v254, %v281
        %284 = vrot.lane.b32.xlu0 %v282, 8
        %v285 = vpop.permute.xlu0 %284
        %v287 = vmul.f32 %v258, %v285
        %289 = vrot.lane.b32.xlu0 %v287, 120
        %v290 = vpop.permute.xlu0 %289
        %v292 = vadd.f32 %v278, %v290
        %s293 = sadd.s32 %s256, 1
        %s294 = scalar_lea.vmem [#allocation2], %s293
        %v295 = vld [vmem:[%s294] sm:$0xff]
        %v296 = vlaneseq
        %v297 = vshrl.u32 %v296, 7
        %v298 = vsub.s32 3, %v297
        %v299 = vrot.slane %v254, %v298
        %v300 = vmul.f32 %v295, %v299
        %v301 = vadd.f32 %v292, %v300
        %v302 = vlaneseq
        %v303 = vshrl.u32 %v302, 7
        %v304 = vsub.s32 4, %v303
        %v305 = vrot.slane %v254, %v304
        %307 = vrot.lane.b32.xlu0 %v305, 4
        %v308 = vpop.permute.xlu0 %307
        %v310 = vmul.f32 %v295, %v308
        %312 = vrot.lane.b32.xlu0 %v310, 124
        %v313 = vpop.permute.xlu0 %312
        %v315 = vadd.f32 %v301, %v313
        %v316 = vlaneseq
        %v317 = vshrl.u32 %v316, 7
        %v318 = vsub.s32 5, %v317
        %v319 = vrot.slane %v254, %v318
        %321 = vrot.lane.b32.xlu0 %v319, 8
        %v322 = vpop.permute.xlu0 %321
        %v324 = vmul.f32 %v295, %v322
        %326 = vrot.lane.b32.xlu0 %v324, 120
        %v327 = vpop.permute.xlu0 %326
        %v329 = vadd.f32 %v315, %v327
        %s330 = sadd.s32 %s256, 2
        %s331 = scalar_lea.vmem [#allocation2], %s330
        %v332 = vld [vmem:[%s331] sm:$0xff]
        %v333 = vlaneseq
        %v334 = vshrl.u32 %v333, 7
        %v335 = vsub.s32 6, %v334
        %v336 = vrot.slane %v254, %v335
        %v337 = vmul.f32 %v332, %v336
        %v338 = vadd.f32 %v329, %v337
        %v339 = vlaneseq
        %v340 = vshrl.u32 %v339, 7
        %v341 = vsub.s32 7, %v340
        %v342 = vrot.slane %v254, %v341
        %344 = vrot.lane.b32.xlu0 %v342, 4
        %v345 = vpop.permute.xlu0 %344
        %v347 = vmul.f32 %v332, %v345
        %349 = vrot.lane.b32.xlu0 %v347, 124
        %v350 = vpop.permute.xlu0 %349
        %v352 = vadd.f32 %v338, %v350
        %v353 = vlaneseq
        %v354 = vshrl.u32 %v353, 7
        %v355 = vsub.s32 0, %v354
        %v356 = vrot.slane %v255, %v355
        %358 = vrot.lane.b32.xlu0 %v356, 8
        %v359 = vpop.permute.xlu0 %358
        %v361 = vmul.f32 %v332, %v359
        %363 = vrot.lane.b32.xlu0 %v361, 120
        %v364 = vpop.permute.xlu0 %363
        %v366 = vadd.f32 %v352, %v364
        %v367 = vld [vmem:[#allocation8] sm:$0xff]
        %v368 = vld [vmem:[#allocation8 + $0x8] sm:$0xff]
        %v369 = vld [vmem:[#allocation8 + $0x10] sm:$0xff]
        %v370 = vld [vmem:[#allocation8 + $0x18] sm:$0xff]
        %v371 = vld [vmem:[#allocation8 + $0x20] sm:$0xff]
        %v372 = vld [vmem:[#allocation8 + $0x28] sm:$0xff]
        %v373 = vld [vmem:[#allocation8 + $0x30] sm:$0xff]
        %v374 = vld [vmem:[#allocation8 + $0x38] sm:$0xff]
        %vm375 = vcmask 523264
        %v377 = vsel %vm375, %v366, 0
        %379 = vmatprep.subr.mxu0 0.0
        %380 = vmatpush1.msra.mxu0 %v367
        %381 = vmatprep.subr.mxu0 0.0
        %382 = vmatpush1.msra.mxu0 %v368
        %383 = vmatprep.subr.mxu0 0.0
        %384 = vmatpush1.msra.mxu0 %v369
        %385 = vmatprep.subr.mxu0 0.0
        %386 = vmatpush1.msra.mxu0 %v370
        %387 = vmatprep.subr.mxu0 0.0
        %388 = vmatpush1.msra.mxu0 %v371
        %389 = vmatprep.subr.mxu0 0.0
        %390 = vmatpush1.msra.mxu0 %v372
        %391 = vmatprep.subr.mxu0 0.0
        %392 = vmatpush1.msra.mxu0 %v373
        %393 = vmatprep.subr.mxu0 0.0
        %394 = vmatpush1.msra.mxu0 %v374
        %395 = vmatprep.subr.mxu0 0.0
        %396 = vmatpush1.msra.mxu0 0.0
        %397 = vmatprep.subr.mxu0 0.0
        %398 = vmatpush1.msra.mxu0 0.0
        %399 = vmatprep.subr.mxu0 0.0
        %400 = vmatpush1.msra.mxu0 0.0
        %401 = vmatprep.subr.mxu0 0.0
        %402 = vmatpush1.msra.mxu0 0.0
        %403 = vmatprep.subr.mxu0 0.0
        %404 = vmatpush1.msra.mxu0 0.0
        %405 = vmatprep.subr.mxu0 0.0
        %406 = vmatpush1.msra.mxu0 0.0
        %407 = vmatprep.subr.mxu0 0.0
        %408 = vmatpush1.msra.mxu0 0.0
        %409 = vmatprep.subr.mxu0 0.0
        %410 = vmatpush1.msra.mxu0 0.0
        %411 = vmatprep.subr.mxu0 0.0
        %412 = vmatpush1.msra.mxu0 0.0
        %413 = vmatprep.subr.mxu0 0.0
        %414 = vmatpush1.msra.mxu0 0.0
        %415 = vmatprep.subr.mxu0 0.0
        %416 = vmatpush1.msra.mxu0 0.0
        %417 = vmatprep.subr.mxu0 0.0
        %418 = vmatpush1.msra.mxu0 0.0
        %419 = vmatprep.subr.mxu0 0.0
        %420 = vmatpush1.msra.mxu0 0.0
        %421 = vmatprep.subr.mxu0 0.0
        %422 = vmatpush1.msra.mxu0 0.0
        %423 = vmatprep.subr.mxu0 0.0
        %424 = vmatpush1.msra.mxu0 0.0
        %425 = vmatprep.subr.mxu0 0.0
        %426 = vmatpush1.msra.mxu0 0.0
        %427 = vmatprep.subr.mxu0 0.0
        %428 = vmatpush1.msra.mxu0 0.0
        %429 = vmatprep.subr.mxu0 0.0
        %430 = vmatpush1.msra.mxu0 0.0
        %431 = vmatprep.subr.mxu0 0.0
        %432 = vmatpush1.msra.mxu0 0.0
        %433 = vmatprep.subr.mxu0 0.0
        %434 = vmatpush1.msra.mxu0 0.0
        %435 = vmatprep.subr.mxu0 0.0
        %436 = vmatpush1.msra.mxu0 0.0
        %437 = vmatprep.subr.mxu0 0.0
        %438 = vmatpush1.msra.mxu0 0.0
        %439 = vmatprep.subr.mxu0 0.0
        %440 = vmatpush1.msra.mxu0 0.0
        %441 = vmatprep.subr.mxu0 0.0
        %442 = vmatpush1.msra.mxu0 0.0
        %443 = vmatprep.mubr.f32.mxu0 0.0
        %444 = vmatmul.mubr.f32.gmra.mrb[0].mxu0 %v377
        %v445 = vpop.f32.mrb[0].mxu0
        %v446 = vadd.f32 0.0, %v445
        %v447 = vpop.f32.mrb[0].mxu0
        %448 = vdwg.mxu0
        %449 = vst [vmem:[%s231] sm:$0xff] %v446
        %s450 = sand.u32 %s111, 1
        %s451 = scalar_lea.sflag [#allocation5], %s450
        %s452 = sand.u32 %s111, 1
        %s453 = smul.addr %s452, 8
        %s454 = scalar_lea.vmem [#allocation9], %s453
        // Predicated region
        $region49: #{tpu_custom_call.1} parent=31 // pred_check
          %p455 = pneg %p121
        $region50: #{tpu_custom_call.1} parent=31 // pred_check_branch
          %457 = sbr.rel (%p455) target = $region52
        $region51: #{tpu_custom_call.1} parent=31 // pred_region
          %s459 = ssub.s32 128, 128
          %460 = vsyncadd %s451, %s459
          %s461 = smul.addr %s25, 2
          %s462 = sadd.s32 %s26, %s461
          %s463 = smul.addr %s462, 128
          %s464 = scalar_lea.hbm %s3, %s463
          %s466 = sshll.u32 %s454, 4
          %s467 = int_to_ptr.vmem [resolvable:$true] %s466
          %469 = dma.vmem_to_hbm [thread:$0]  %s467, 128, %s464, %s451
        $region52: #{tpu_custom_call.1} parent=31 // pred_fallthru
          _
      $region32: #{tpu_custom_call.1} parent=5 // pred_fallthru
        _
      %p470 = scmp.le.s32.totalorder 2, %s16
      // Predicated region
      $region53: #{tpu_custom_call.1} parent=5 // pred_check
        %p471 = pneg %p470
      $region54: #{tpu_custom_call.1} parent=5 // pred_check_branch
        %473 = sbr.rel (%p471) target = $region56
      $region55: #{tpu_custom_call.1} parent=5 // pred_region
        %s474 = ssub.s32 %s16, 2
        // Predicated region
        $region57: #{tpu_custom_call.1} parent=55 // pred_check
          %p475 = pneg %p127
        $region58: #{tpu_custom_call.1} parent=55 // pred_check_branch
          %477 = sbr.rel (%p475) target = $region60
        $region59: #{tpu_custom_call.1} parent=55 // pred_region
          %s478 = sand.u32 %s112, 1
          %s479 = scalar_lea.sflag [#allocation5], %s478
          %s480 = sand.u32 %s112, 1
          %s481 = smul.addr %s480, 8
          %s482 = scalar_lea.vmem [#allocation9], %s481
          %483 = dma.done %s479, 128
        $region60: #{tpu_custom_call.1} parent=55 // pred_fallthru
          _
      $region56: #{tpu_custom_call.1} parent=5 // pred_fallthru
        _
    $region6: #{tpu_custom_call.1} parent=1 // loop_footer
      %s20 = sadd.s32 1, %s16
    $region7: #{tpu_custom_call.1} parent=1 // loop_footer_branch
      %15 = sbr.rel target = $region3
    $region8: #{tpu_custom_call.1} parent=1 // loop_exit
      _
    %484 = vsyncpa [#allocation4], 1
    %s485 = scalar_lea.sflag [#allocation4], 1
    %486 = vsyncpa %s485, 1
    %487 = vsyncpa [#allocation7], 1
    %488 = vsyncpa [#allocation5], 1
    %s489 = scalar_lea.sflag [#allocation5], 1
    %490 = vsyncpa %s489, 1

</llo_original>
